<compile_context>
chip_gen: v6e
topology: v6e:2x2x1
jax: 0.10.0
libtpu: 0.0.40
codegen_flags: <defaults>
</compile_context>

<pallas_src>
import math
import functools

import jax
import jax.numpy as jnp
from jax import lax
from jax.experimental import pallas as pl
from jax.experimental.pallas import tpu as pltpu


# --------------------------------------------------------------------------
# Phase 1: kp/vp = (E@X)@Wk, (F@X)@Wv, accumulated over sequence tiles.
# --------------------------------------------------------------------------
def _linformer_kv_kernel(x_ref, ef_ref, wkv_ref, kp_ref, vp_ref, acc_ref):
    """Grid (B, N/TN), N axis is an accumulation ("arbitrary") axis.

    x_ref   : (1, TN, dim)       bf16 sequence tile of this batch element
    ef_ref  : (2*kproj, TN)      bf16 stacked [E; F] columns of this tile
    wkv_ref : (dim, 2*H*d)       bf16 [Wk | Wv] (pre-transposed, resident)
    kp_ref  : (1, kproj, H*d)    bf16 output K' (written at last tile)
    vp_ref  : (1, kproj, H*d)    bf16 output V' (written at last tile)
    acc_ref : (2*kproj, dim) f32 VMEM scratch accumulating [E@X ; F@X]
    """
    j = pl.program_id(1)

    @pl.when(j == 0)
    def _():
        acc_ref[...] = jnp.zeros_like(acc_ref)

    # (2k, TN) @ (TN, dim) -> (2k, dim), accumulated over the sequence tiles.
    acc_ref[...] += jnp.dot(ef_ref[...], x_ref[0],
                            preferred_element_type=jnp.float32)

    @pl.when(j == pl.num_programs(1) - 1)
    def _():
        two_k = acc_ref.shape[0]
        kproj = two_k // 2
        hd = wkv_ref.shape[1] // 2
        xef = acc_ref[...].astype(wkv_ref.dtype)          # (2k, dim) bf16
        wkv = wkv_ref[...]                                # (dim, 2*hd)
        kp = jnp.dot(xef[:kproj], wkv[:, :hd],
                     preferred_element_type=jnp.float32)  # (kproj, hd)
        vp = jnp.dot(xef[kproj:], wkv[:, hd:],
                     preferred_element_type=jnp.float32)  # (kproj, hd)
        kp_ref[0] = kp.astype(kp_ref.dtype)
        vp_ref[0] = vp.astype(vp_ref.dtype)


# --------------------------------------------------------------------------
# Phase 2: per sequence tile, Q projection + per-head softmax attention.
# --------------------------------------------------------------------------
def _linformer_attn_kernel(x_ref, wq_ref, kp_ref, vp_ref, o_ref, o_acc_ref, *,
                           n_heads, inner_dim):
    """Grid (B, N/TN), both axes "parallel".

    x_ref   : (1, TN, dim)      bf16 sequence tile
    wq_ref  : (dim, H*d)        bf16 Q weight, 1/sqrt(d) pre-folded (resident)
    kp_ref  : (1, kproj, H*d)   bf16 K' of this batch element
    vp_ref  : (1, kproj, H*d)   bf16 V'
    o_ref   : (1, TN, H*d)      lane-dense output tile, 'b n (h d)' order
    o_acc_ref : (TN, H*d) f32   VMEM scratch for per-head results
    """
    H, d = n_heads, inner_dim

    x = x_ref[0]                                            # (TN, dim)
    # Scale already folded into wq -> no per-score multiply below.
    q_all = jnp.dot(x, wq_ref[...],
                    preferred_element_type=jnp.float32)     # (TN, H*d) f32
    q_all = q_all.astype(kp_ref.dtype)                      # one cast to bf16

    kp_all = kp_ref[0]                                      # (kproj, H*d)
    vp_all = vp_ref[0]

    contract_last = (((1,), (1,)), ((), ()))                # q @ kp^T, no transpose
    for h in range(H):                                      # static unroll over heads
        sl = slice(h * d, (h + 1) * d)
        s = lax.dot_general(q_all[:, sl], kp_all[:, sl], contract_last,
                            preferred_element_type=jnp.float32)   # (TN, kproj) f32
        s = s - jnp.max(s, axis=-1, keepdims=True)
        p = jnp.exp(s)
        # EUP reciprocal keeps the divide off the VALU.
        p = p * pl.reciprocal(jnp.sum(p, axis=-1, keepdims=True), approx=True)
        # Write this head into the persistent scratch (bounds live ranges,
        # avoids a concatenate/relayout at the end).
        o_acc_ref[:, sl] = jnp.dot(p.astype(vp_all.dtype), vp_all[:, sl],
                                   preferred_element_type=jnp.float32)

    # Single lane-dense store, already in 'b n (h d)' order.
    o_ref[0] = o_acc_ref[...].astype(o_ref.dtype)


# --------------------------------------------------------------------------
# Wrapper
# --------------------------------------------------------------------------
def linformer_attention(x, w_qkv, e_w, f_w, *, n_heads, inner_dim,
                        tile_n=None, compute_dtype=jnp.bfloat16):
    """x: (B, N, dim); w_qkv: (3*H*d, dim) [nn.Linear layout]; e_w/f_w: (k, max_len).

    Returns (B, N, H*d) in `compute_dtype` (matches torch path when H*d == dim).
    """
    B, N, dim = x.shape
    H, d = n_heads, inner_dim
    hd = H * d
    kproj = e_w.shape[0]

    if hd != dim:
        # TODO(synk): out_proj branch (H*d != dim) not implemented.
        raise NotImplementedError("kernel path assumes inner_dim * n_heads == dim")

    # ---- sequence tiling ---------------------------------------------------
    if tile_n is None:
        tile_n = min(N, 512)
    tile_n = min(tile_n, N)
    if N % tile_n != 0 or (tile_n != N and tile_n % 8 != 0):
        tile_n = N                      # fall back to a single tile
    nt = N // tile_n

    # ---- weight prep (once, in the wrapper) ---------------------------------
    scale = 1.0 / math.sqrt(d)
    # nn.Linear weight layout is (out, in); transpose so the kernel never does.
    wq = (jnp.transpose(w_qkv[:hd, :]) * scale).astype(compute_dtype)   # (dim, hd)
    wkv = jnp.transpose(w_qkv[hd:, :]).astype(compute_dtype)            # (dim, 2*hd)
    # Slice E/F columns if sequence is shorter than max_length (torch branch),
    # and stack them so phase 1 issues one wider MXU matmul.
    ef = jnp.concatenate([e_w[:, :N], f_w[:, :N]], axis=0).astype(compute_dtype)
    x_c = x.astype(compute_dtype)

    # ---- explicit VMEM budget (double-buffered blocks + scratch, 2x headroom)
    isz = jnp.dtype(compute_dtype).itemsize
    p1 = (2 * isz * (tile_n * dim + 2 * kproj * tile_n + dim * 2 * hd)
          + 2 * 2 * isz * kproj * hd + 4 * 2 * kproj * dim)
    p2 = (2 * isz * (tile_n * dim + dim * hd + 2 * kproj * hd)
          + 2 * isz * tile_n * hd + 4 * tile_n * hd)
    vmem_limit = int(min(64 * 2**20, max(32 * 2**20, 2 * max(p1, p2))))

    # ---- phase 1: kp / vp --------------------------------------------------
    kp, vp = pl.pallas_call(
        _linformer_kv_kernel,
        out_shape=(jax.ShapeDtypeStruct((B, kproj, hd), compute_dtype),
                   jax.ShapeDtypeStruct((B, kproj, hd), compute_dtype)),
        grid_spec=pltpu.PrefetchScalarGridSpec(
            num_scalar_prefetch=0,
            grid=(B, nt),
            in_specs=[
                pl.BlockSpec((1, tile_n, dim), lambda b, j: (b, j, 0)),      # x tile
                pl.BlockSpec((2 * kproj, tile_n), lambda b, j: (0, j)),      # [E;F] cols
                pl.BlockSpec((dim, 2 * hd), lambda b, j: (0, 0)),            # [Wk|Wv]
            ],
            out_specs=[
                pl.BlockSpec((1, kproj, hd), lambda b, j: (b, 0, 0)),
                pl.BlockSpec((1, kproj, hd), lambda b, j: (b, 0, 0)),
            ],
            scratch_shapes=[pltpu.VMEM((2 * kproj, dim), jnp.float32)],
        ),
        compiler_params=pltpu.CompilerParams(
            dimension_semantics=("parallel", "arbitrary"),
            vmem_limit_bytes=vmem_limit),
    )(x_c, ef, wkv)

    # ---- phase 2: Q projection + softmax attention, tiled over N ------------
    out = pl.pallas_call(
        functools.partial(_linformer_attn_kernel, n_heads=H, inner_dim=d),
        out_shape=jax.ShapeDtypeStruct((B, N, hd), compute_dtype),
        grid_spec=pltpu.PrefetchScalarGridSpec(
            num_scalar_prefetch=0,
            grid=(B, nt),
            in_specs=[
                pl.BlockSpec((1, tile_n, dim), lambda b, j: (b, j, 0)),      # x tile
                pl.BlockSpec((dim, hd), lambda b, j: (0, 0)),                # Wq (resident)
                pl.BlockSpec((1, kproj, hd), lambda b, j: (b, 0, 0)),        # K'
                pl.BlockSpec((1, kproj, hd), lambda b, j: (b, 0, 0)),        # V'
            ],
            out_specs=pl.BlockSpec((1, tile_n, hd), lambda b, j: (b, j, 0)),
            scratch_shapes=[pltpu.VMEM((tile_n, hd), jnp.float32)],
        ),
        compiler_params=pltpu.CompilerParams(
            dimension_semantics=("parallel", "parallel"),
            vmem_limit_bytes=vmem_limit),
    )(x_c, wq, kp, vp)

    return out


# --------------------------------------------------------------------------
# Pure-JAX f32 reference (mirrors the torch module, full=False, no masks)
# --------------------------------------------------------------------------
def _reference(x, w_qkv, e_w, f_w, *, n_heads, inner_dim):
    B, N, dim = x.shape
    H, d = n_heads, inner_dim
    qkv = x @ w_qkv.T
    q, k, v = jnp.split(qkv, 3, axis=-1)

    def split_heads(t):
        return jnp.transpose(t.reshape(B, N, H, d), (0, 2, 1, 3))

    q, k, v = map(split_heads, (q, k, v))
    e_use = e_w[:, :N]
    f_use = f_w[:, :N]
    k = jnp.einsum("pn,bhnd->bhpd", e_use, k)
    v = jnp.einsum("pn,bhnd->bhpd", f_use, v)
    s = jnp.einsum("bhnd,bhpd->bhnp", q, k) / math.sqrt(d)
    p = jax.nn.softmax(s, axis=-1)
    o = jnp.einsum("bhnp,bhpd->bhnd", p, v)
    return jnp.transpose(o, (0, 2, 1, 3)).reshape(B, N, H * d)


if __name__ == "__main__":
    # module config: dim=32, n_heads=2 -> inner_dim=16, k=8, sequence_length=256
    B, N, dim = 2, 256, 32
    n_heads = 2
    inner_dim = dim // n_heads          # default inner_dim
    k_proj = 8
    max_length = 256

    key = jax.random.PRNGKey(0)
    kx, kqkv, ke, kf = jax.random.split(key, 4)

    x = jax.random.normal(kx, (B, N, dim), dtype=jnp.float32)
    # deterministic synthetic weights (nn.Linear weight layout: (out, in))
    w_qkv = jax.random.normal(kqkv, (inner_dim * n_heads * 3, dim),
                              dtype=jnp.float32) * 0.05
    e_w = jax.random.normal(ke, (k_proj, max_length), dtype=jnp.float32) * 0.1
    f_w = jax.random.normal(kf, (k_proj, max_length), dtype=jnp.float32) * 0.1

    out = linformer_attention(x, w_qkv, e_w, f_w,
                              n_heads=n_heads, inner_dim=inner_dim,
                              tile_n=128)                 # exercises the N-tiled path
    out = jax.block_until_ready(out)

    ref = _reference(x, w_qkv, e_w, f_w, n_heads=n_heads, inner_dim=inner_dim)
    assert out.shape == (B, N, dim)
    # tolerance accommodates bf16 matmul operands + approx EUP reciprocal
    err = float(jnp.max(jnp.abs(out.astype(jnp.float32) - ref)))
    assert err < 3e-2, f"mismatch vs reference: max abs err {err}"

    print("KERNEL_OK")
</pallas_src>

<mosaic_0001>
module attributes {stable_mosaic.version = 11 : i64} {
  func.func @_linformer_kv_kernel(%arg0: i32, %arg1: i32, %arg2: memref<1x128x32xbf16, #tpu.memory_space<vmem>>, %arg3: memref<16x128xbf16, #tpu.memory_space<vmem>>, %arg4: memref<32x64xbf16, #tpu.memory_space<vmem>>, %arg5: memref<1x8x32xbf16, #tpu.memory_space<vmem>>, %arg6: memref<1x8x32xbf16, #tpu.memory_space<vmem>>, %arg7: memref<16x32xf32, #tpu.memory_space<vmem>>) attributes {dimension_semantics = [#tpu.dimension_semantics<parallel>, #tpu.dimension_semantics<arbitrary>], iteration_bounds = array<i64: 2, 2>, scalar_prefetch = 0 : i64, scratch_operands = 1 : i64, tpu.core_type = #tpu.core_type<tc>, window_params = [{transform_indices = @transform_0, window_bounds = array<i64: 1, 128, 32>}, {transform_indices = @transform_1, window_bounds = array<i64: 16, 128>}, {pipeline_mode = #tpu.pipeline_mode<synchronous>, transform_indices = @transform_2, window_bounds = array<i64: 32, 64>}, {transform_indices = @transform_3, window_bounds = array<i64: 1, 8, 32>}, {transform_indices = @transform_4, window_bounds = array<i64: 1, 8, 32>}]} {
    %c0_i32 = arith.constant 0 : i32
    %0 = arith.cmpi eq, %arg1, %c0_i32 : i32
    %1 = arith.extui %0 : i1 to i32
    %c0_i32_0 = arith.constant 0 : i32
    %2 = arith.cmpi ne, %1, %c0_i32_0 : i32
    scf.if %2 {
      %cst_10 = arith.constant 0.000000e+00 : f32
      %13 = vector.broadcast %cst_10 : f32 to vector<16x32xf32>
      %c0_11 = arith.constant 0 : index
      %c0_12 = arith.constant 0 : index
      %14 = vector.load %arg7[%c0_11, %c0_12] : memref<16x32xf32, #tpu.memory_space<vmem>>, vector<16x32xf32>
      tpu.vector_store %arg7[%c0_11, %c0_12], %13 {strides = array<i32>} : memref<16x32xf32, #tpu.memory_space<vmem>>, vector<16x32xf32>,
    } else {
    }
    %c0 = arith.constant 0 : index
    %c0_1 = arith.constant 0 : index
    %3 = vector.load %arg7[%c0, %c0_1] : memref<16x32xf32, #tpu.memory_space<vmem>>, vector<16x32xf32>
    %c0_2 = arith.constant 0 : index
    %c0_3 = arith.constant 0 : index
    %4 = vector.load %arg3[%c0_2, %c0_3] : memref<16x128xbf16, #tpu.memory_space<vmem>>, vector<16x128xbf16>
    %c0_4 = arith.constant 0 : index
    %c0_5 = arith.constant 0 : index
    %c0_6 = arith.constant 0 : index
    %5 = vector.load %arg2[%c0_4, %c0_5, %c0_6] : memref<1x128x32xbf16, #tpu.memory_space<vmem>>, vector<1x128x32xbf16>
    %6 = vector.shape_cast %5 : vector<1x128x32xbf16> to vector<128x32xbf16>
    %cst = arith.constant dense<0.000000e+00> : vector<16x32xf32>
    %7 = tpu.matmul %4, %6, %cst {dimension_numbers = #tpu.dot_dimension_numbers<[1], [0], [0], [1], [0, 0, 1, 1], [], []>} : vector<16x128xbf16>, vector<128x32xbf16>, vector<16x32xf32> -> vector<16x32xf32>
    %8 = arith.addf %3, %7 : vector<16x32xf32>
    %c0_7 = arith.constant 0 : index
    %c0_8 = arith.constant 0 : index
    %9 = vector.load %arg7[%c0_7, %c0_8] : memref<16x32xf32, #tpu.memory_space<vmem>>, vector<16x32xf32>
    tpu.vector_store %arg7[%c0_7, %c0_8], %8 {strides = array<i32>} : memref<16x32xf32, #tpu.memory_space<vmem>>, vector<16x32xf32>,
    %c1_i32 = arith.constant 1 : i32
    %10 = arith.cmpi eq, %arg1, %c1_i32 : i32
    %11 = arith.extui %10 : i1 to i32
    %c0_i32_9 = arith.constant 0 : i32
    %12 = arith.cmpi ne, %11, %c0_i32_9 : i32
    scf.if %12 {
      %c0_10 = arith.constant 0 : index
      %c0_11 = arith.constant 0 : index
      %13 = vector.load %arg7[%c0_10, %c0_11] : memref<16x32xf32, #tpu.memory_space<vmem>>, vector<16x32xf32>
      %14 = arith.truncf %13 : vector<16x32xf32> to vector<16x32xbf16>
      %c0_12 = arith.constant 0 : index
      %c0_13 = arith.constant 0 : index
      %15 = vector.load %arg4[%c0_12, %c0_13] : memref<32x64xbf16, #tpu.memory_space<vmem>>, vector<32x64xbf16>
      %16 = vector.extract_strided_slice %14 {offsets = [0, 0], sizes = [8, 32], strides = [1, 1]} : vector<16x32xbf16> to vector<8x32xbf16>
      %17 = vector.extract_strided_slice %15 {offsets = [0, 0], sizes = [32, 32], strides = [1, 1]} : vector<32x64xbf16> to vector<32x32xbf16>
      %cst_14 = arith.constant dense<0.000000e+00> : vector<8x32xf32>
      %18 = tpu.matmul %16, %17, %cst_14 {dimension_numbers = #tpu.dot_dimension_numbers<[1], [0], [0], [1], [0, 0, 1, 1], [], []>} : vector<8x32xbf16>, vector<32x32xbf16>, vector<8x32xf32> -> vector<8x32xf32>
      %19 = vector.extract_strided_slice %14 {offsets = [8, 0], sizes = [8, 32], strides = [1, 1]} : vector<16x32xbf16> to vector<8x32xbf16>
      %20 = vector.extract_strided_slice %15 {offsets = [0, 32], sizes = [32, 32], strides = [1, 1]} : vector<32x64xbf16> to vector<32x32xbf16>
      %cst_15 = arith.constant dense<0.000000e+00> : vector<8x32xf32>
      %21 = tpu.matmul %19, %20, %cst_15 {dimension_numbers = #tpu.dot_dimension_numbers<[1], [0], [0], [1], [0, 0, 1, 1], [], []>} : vector<8x32xbf16>, vector<32x32xbf16>, vector<8x32xf32> -> vector<8x32xf32>
      %22 = arith.truncf %18 : vector<8x32xf32> to vector<8x32xbf16>
      %c0_16 = arith.constant 0 : index
      %c0_17 = arith.constant 0 : index
      %c0_18 = arith.constant 0 : index
      %23 = vector.load %arg5[%c0_16, %c0_17, %c0_18] : memref<1x8x32xbf16, #tpu.memory_space<vmem>>, vector<1x8x32xbf16>
      %24 = vector.shape_cast %23 : vector<1x8x32xbf16> to vector<8x32xbf16>
      %25 = vector.shape_cast %22 : vector<8x32xbf16> to vector<1x8x32xbf16>
      tpu.vector_store %arg5[%c0_16, %c0_17, %c0_18], %25 {strides = array<i32>} : memref<1x8x32xbf16, #tpu.memory_space<vmem>>, vector<1x8x32xbf16>,
      %26 = arith.truncf %21 : vector<8x32xf32> to vector<8x32xbf16>
      %c0_19 = arith.constant 0 : index
      %c0_20 = arith.constant 0 : index
      %c0_21 = arith.constant 0 : index
      %27 = vector.load %arg6[%c0_19, %c0_20, %c0_21] : memref<1x8x32xbf16, #tpu.memory_space<vmem>>, vector<1x8x32xbf16>
      %28 = vector.shape_cast %27 : vector<1x8x32xbf16> to vector<8x32xbf16>
      %29 = vector.shape_cast %26 : vector<8x32xbf16> to vector<1x8x32xbf16>
      tpu.vector_store %arg6[%c0_19, %c0_20, %c0_21], %29 {strides = array<i32>} : memref<1x8x32xbf16, #tpu.memory_space<vmem>>, vector<1x8x32xbf16>,
    } else {
    }
    return
  }
  func.func @transform_0(%arg0: i32, %arg1: i32) -> (i32, i32, i32) {
    %c0_i32 = arith.constant 0 : i32
    %c0_i32_0 = arith.constant 0 : i32
    return %arg0, %arg1, %c0_i32 : i32, i32, i32
  }
  func.func @transform_1(%arg0: i32, %arg1: i32) -> (i32, i32) {
    %c0_i32 = arith.constant 0 : i32
    %c0_i32_0 = arith.constant 0 : i32
    return %c0_i32, %arg1 : i32, i32
  }
  func.func @transform_2(%arg0: i32, %arg1: i32) -> (i32, i32) {
    %c0_i32 = arith.constant 0 : i32
    %c0_i32_0 = arith.constant 0 : i32
    %c0_i32_1 = arith.constant 0 : i32
    return %c0_i32, %c0_i32_0 : i32, i32
  }
  func.func @transform_3(%arg0: i32, %arg1: i32) -> (i32, i32, i32) {
    %c0_i32 = arith.constant 0 : i32
    %c0_i32_0 = arith.constant 0 : i32
    %c0_i32_1 = arith.constant 0 : i32
    return %arg0, %c0_i32, %c0_i32_0 : i32, i32, i32
  }
  func.func @transform_4(%arg0: i32, %arg1: i32) -> (i32, i32, i32) {
    %c0_i32 = arith.constant 0 : i32
    %c0_i32_0 = arith.constant 0 : i32
    %c0_i32_1 = arith.constant 0 : i32
    return %arg0, %c0_i32, %c0_i32_0 : i32, i32, i32
  }
}

</mosaic_0001>

<llo_original>
// kernel: tpu_custom_call.1
$region0: #{tpu_custom_call.1}
  #allocation0 [shape = 'u32[]', space=smem, size = 0x4, offset = 0x4, fixed_abs, tag = 'smem constant byte address 0x4 - core index']
  #allocation1 [shape = 'u32[144,128]{1,0:T(1,128)}', space=vmem, size = 0x12000, scoped, tag = 'internal scratch']
  #allocation2 [shape = 'f32[16,32]{1,0:T(8,128)}', space=vmem, size = 0x2000, scoped, tag = 'scratch operand']
  %s0 = inlined_call_operand.vmem [shape: bf16[2,256,32], index: 0, kind: input, shape index: {}]
  %s1 = inlined_call_operand.vmem [shape: bf16[16,256], index: 1, kind: input, shape index: {}]
  %s2 = inlined_call_operand.vmem [shape: bf16[32,64], index: 2, kind: input, shape index: {}]
  %s3 = inlined_call_operand.hbm [shape: bf16[2,8,32], index: 3, kind: output, shape index: {0}]
  %s4 = inlined_call_operand.hbm [shape: bf16[2,8,32], index: 4, kind: output, shape index: {1}]
  %5 = xla_tuple %s3, %s4
  %s6 = sld [smem:[#allocation0]]
  $region102: #{tpu_custom_call.1} parent=0
    _
  %s8 = ssub.s32 1, %s6
  %s9 = scalar_select 0, %s8, %s6
  $region1: #{tpu_custom_call.1} parent=0
    #allocation3 [shape = 'u8[8192]{0}', space=vmem, size = 0x2000, scoped, tag = 'input window, operand 1']
    #allocation4 [shape = 'u8[4096]{0}', space=vmem, size = 0x1000, scoped, tag = 'output window, operand 0']
    #allocation5 [shape = 's32[2]{0}', space=sflag, size = 0x8, scoped, tag = 'scoped memory for tpu_custom_call.1']
    #allocation6 [shape = 'u8[4096]{0}', space=vmem, size = 0x1000, scoped, tag = 'output window, operand 1']
    #allocation7 [shape = 's32[2]{0}', space=sflag, size = 0x8, scoped, tag = 'scoped memory for tpu_custom_call.1']
    %10 = vsyncpa [#allocation5], 0
    %s11 = scalar_lea.sflag [#allocation5], 1
    %12 = vsyncpa %s11, 0
    %13 = vsyncpa [#allocation7], 0
    %s14 = scalar_lea.sflag [#allocation7], 1
    %15 = vsyncpa %s14, 0
    loop: start=0, step=1, limit=6
    $region2: #{tpu_custom_call.1} parent=1 // loop_pre_header
      _
    $region3: #{tpu_custom_call.1} parent=1 // loop_header
      %s17 = sphi 0, %s21
      %p18 = scmp.ge.s32.totalorder %s17, 6
      %s24 = sphi 0, %s36
      %s25 = sphi 0, %s32
      %s26 = sphi 0, %s24
      %s27 = sphi 0, %s25
      %s28 = sphi 0, %s26
      %s29 = sphi 0, %s27
      %s41 = sphi 0, %s43
      %s44 = sphi 0, %s41
      %s45 = sphi 0, %s44
      %s61 = sphi 0, %s45
      %s67 = sphi 0, %s69
      %s70 = sphi 0, %s67
      %s71 = sphi 0, %s70
      %s87 = sphi 0, %s71
      %s91 = sphi 0, %s91
      %s93 = sphi 0, %s91
      %s94 = sphi 0, %s93
      %s108 = sphi 0, %s94
      %s114 = sphi 0, %s116
      %s117 = sphi 0, %s114
      %s118 = sphi 0, %s117
      %s134 = sphi 0, %s118
      %s140 = sphi 0, %s142
      %s143 = sphi 0, %s140
      %s144 = sphi 0, %s143
      %s160 = sphi 0, %s144
    $region4: #{tpu_custom_call.1} parent=1 // loop_header_branch
      %20 = sbr.rel (%p18) target = $region8
    $region5: #{tpu_custom_call.1} parent=1 // loop_body
      %s22 = ssub.s32 %s17, 1
      %s23 = ssub.s32 %s17, 2
      %s30 = sadd.s32 1, %s25
      %p31 = scmp.ge.s32.totalorder %s30, 2
      %s32 = scalar_select %p31, 0, %s30
      %s33 = sadd.s32 1, %s24
      %s34 = scalar_select %p31, %s33, %s24
      %p35 = scmp.ge.s32.totalorder %s34, 2
      %s36 = scalar_select %p35, 0, %s34
      %s37 = ssub.s32 %s24, %s36
      %s38 = ssub.s32 %s25, %s32
      %s39 = sor.u32 %s37, %s38
      %p40 = scmp.eq.s32.totalorder %s39, 0
      %s42 = sadd.s32 %s41, 1
      %s43 = scalar_select %p40, %s41, %s42
      %p46 = pneg %p40
      %p47 = scmp.eq.s32.totalorder %s17, 3
      %p48 = por %p46, %p47
      %p49 = scmp.ne.s32.totalorder %s41, %s44
      %p50 = scmp.eq.s32.totalorder %s17, 0
      %p51 = por %p49, %p50
      %p52 = scmp.ne.s32.totalorder %s41, %s44
      %p53 = scmp.eq.s32.totalorder %s22, 3
      %p54 = por %p52, %p53
      %p55 = scmp.ne.s32.totalorder %s44, %s45
      %p56 = scmp.eq.s32.totalorder %s22, 0
      %p57 = por %p55, %p56
      %p58 = scmp.ne.s32.totalorder %s44, %s45
      %p59 = scmp.eq.s32.totalorder %s23, 3
      %p60 = por %p58, %p59
      %p62 = scmp.ne.s32.totalorder %s45, %s61
      %p63 = scmp.eq.s32.totalorder %s23, 0
      %p64 = por %p62, %p63
      %s65 = ssub.s32 %s25, %s32
      %p66 = scmp.eq.s32.totalorder %s65, 0
      %s68 = sadd.s32 %s67, 1
      %s69 = scalar_select %p66, %s67, %s68
      %p72 = pneg %p66
      %p73 = scmp.eq.s32.totalorder %s17, 3
      %p74 = por %p72, %p73
      %p75 = scmp.ne.s32.totalorder %s67, %s70
      %p76 = scmp.eq.s32.totalorder %s17, 0
      %p77 = por %p75, %p76
      %p78 = scmp.ne.s32.totalorder %s67, %s70
      %p79 = scmp.eq.s32.totalorder %s22, 3
      %p80 = por %p78, %p79
      %p81 = scmp.ne.s32.totalorder %s70, %s71
      %p82 = scmp.eq.s32.totalorder %s22, 0
      %p83 = por %p81, %p82
      %p84 = scmp.ne.s32.totalorder %s70, %s71
      %p85 = scmp.eq.s32.totalorder %s23, 3
      %p86 = por %p84, %p85
      %p88 = scmp.ne.s32.totalorder %s71, %s87
      %p89 = scmp.eq.s32.totalorder %s23, 0
      %p90 = por %p88, %p89
      %s92 = sadd.s32 %s91, 1
      %p95 = scmp.eq.s32.totalorder %s17, 3
      %p96 = scmp.ne.s32.totalorder %s91, %s93
      %p97 = scmp.eq.s32.totalorder %s17, 0
      %p98 = por %p96, %p97
      %p99 = scmp.ne.s32.totalorder %s91, %s93
      %p100 = scmp.eq.s32.totalorder %s22, 3
      %p101 = por %p99, %p100
      %p102 = scmp.ne.s32.totalorder %s93, %s94
      %p103 = scmp.eq.s32.totalorder %s22, 0
      %p104 = por %p102, %p103
      %p105 = scmp.ne.s32.totalorder %s93, %s94
      %p106 = scmp.eq.s32.totalorder %s23, 3
      %p107 = por %p105, %p106
      %p109 = scmp.ne.s32.totalorder %s94, %s108
      %p110 = scmp.eq.s32.totalorder %s23, 0
      %p111 = por %p109, %p110
      %s112 = ssub.s32 %s24, %s36
      %p113 = scmp.eq.s32.totalorder %s112, 0
      %s115 = sadd.s32 %s114, 1
      %s116 = scalar_select %p113, %s114, %s115
      %p119 = pneg %p113
      %p120 = scmp.eq.s32.totalorder %s17, 3
      %p121 = por %p119, %p120
      %p122 = scmp.ne.s32.totalorder %s114, %s117
      %p123 = scmp.eq.s32.totalorder %s17, 0
      %p124 = por %p122, %p123
      %p125 = scmp.ne.s32.totalorder %s114, %s117
      %p126 = scmp.eq.s32.totalorder %s22, 3
      %p127 = por %p125, %p126
      %p128 = scmp.ne.s32.totalorder %s117, %s118
      %p129 = scmp.eq.s32.totalorder %s22, 0
      %p130 = por %p128, %p129
      %p131 = scmp.ne.s32.totalorder %s117, %s118
      %p132 = scmp.eq.s32.totalorder %s23, 3
      %p133 = por %p131, %p132
      %p135 = scmp.ne.s32.totalorder %s118, %s134
      %p136 = scmp.eq.s32.totalorder %s23, 0
      %p137 = por %p135, %p136
      %s138 = ssub.s32 %s24, %s36
      %p139 = scmp.eq.s32.totalorder %s138, 0
      %s141 = sadd.s32 %s140, 1
      %s142 = scalar_select %p139, %s140, %s141
      %p145 = pneg %p139
      %p146 = scmp.eq.s32.totalorder %s17, 3
      %p147 = por %p145, %p146
      %p148 = scmp.ne.s32.totalorder %s140, %s143
      %p149 = scmp.eq.s32.totalorder %s17, 0
      %p150 = por %p148, %p149
      %p151 = scmp.ne.s32.totalorder %s140, %s143
      %p152 = scmp.eq.s32.totalorder %s22, 3
      %p153 = por %p151, %p152
      %p154 = scmp.ne.s32.totalorder %s143, %s144
      %p155 = scmp.eq.s32.totalorder %s22, 0
      %p156 = por %p154, %p155
      %p157 = scmp.ne.s32.totalorder %s143, %s144
      %p158 = scmp.eq.s32.totalorder %s23, 3
      %p159 = por %p157, %p158
      %p161 = scmp.ne.s32.totalorder %s144, %s160
      %p162 = scmp.eq.s32.totalorder %s23, 0
      %p163 = por %p161, %p162
      %p164 = scmp.le.s32.totalorder 1, %s17
      %p165 = scmp.lt.s32.totalorder %s17, 5
      %p166 = pnand %p164, %p165
      %p167 = pneg %p166
      // Predicated region
      $region9: #{tpu_custom_call.1} parent=5 // pred_check
        _
      $region10: #{tpu_custom_call.1} parent=5 // pred_check_branch
        %169 = sbr.rel (%p166) target = $region12
      $region11: #{tpu_custom_call.1} parent=5 // pred_region
        %s170 = ssub.s32 %s17, 1
        // Predicated region
        $region13: #{tpu_custom_call.1} parent=11 // pred_check
          %p171 = pneg %p104
        $region14: #{tpu_custom_call.1} parent=11 // pred_check_branch
          %173 = sbr.rel (%p171) target = $region16
        $region15: #{tpu_custom_call.1} parent=11 // pred_region
          _
        $region16: #{tpu_custom_call.1} parent=11 // pred_fallthru
          _
      $region12: #{tpu_custom_call.1} parent=5 // pred_fallthru
        _
      %p174 = scmp.lt.s32.totalorder %s17, 4
      // Predicated region
      $region17: #{tpu_custom_call.1} parent=5 // pred_check
        %p175 = pneg %p174
      $region18: #{tpu_custom_call.1} parent=5 // pred_check_branch
        %177 = sbr.rel (%p175) target = $region20
      $region19: #{tpu_custom_call.1} parent=5 // pred_region
        // Predicated region
        $region21: #{tpu_custom_call.1} parent=19 // pred_check
          %p178 = pneg %p51
        $region22: #{tpu_custom_call.1} parent=19 // pred_check_branch
          %180 = sbr.rel (%p178) target = $region24
        $region23: #{tpu_custom_call.1} parent=19 // pred_region
          %s181 = smul.u32 16, %s25
          %p182 = scmp.lt.s32.totalorder %s24, 1
          %s183 = scalar_select %p182, %s24, 1
          %p184 = scmp.lt.s32.totalorder %s181, 31
          %s185 = scalar_select %p184, %s181, 31
          %s186 = smul.addr %s183, 32
          %s187 = sadd.s32 %s185, %s186
          %s188 = smul.addr %s187, 4
          %s189 = scalar_lea.vmem %s0, %s188
          %s190 = smul.u32 16, %s25
        $region24: #{tpu_custom_call.1} parent=19 // pred_fallthru
          _
        // Predicated region
        $region25: #{tpu_custom_call.1} parent=19 // pred_check
          %p191 = pneg %p77
        $region26: #{tpu_custom_call.1} parent=19 // pred_check_branch
          %193 = sbr.rel (%p191) target = $region28
        $region27: #{tpu_custom_call.1} parent=19 // pred_region
          %s194 = sand.u32 %s67, 1
          %s195 = sand.u32 %s67, 1
          %s196 = smul.addr %s195, 8
          %s197 = scalar_lea.vmem [#allocation3], %s196
          %s198 = smul.addr %s25, 4
          %s199 = scalar_lea.vmem %s1, %s198
          // Predicated region
          $region29: #{tpu_custom_call.1} parent=27 // pred_check
            _
          $region30: #{tpu_custom_call.1} parent=27 // pred_check_branch
            %201 = sbr.rel (0) target = $region32
          $region31: #{tpu_custom_call.1} parent=27 // pred_region
            // Predicated region
            $region33: #{tpu_custom_call.1} parent=31 // pred_check
              _
            $region34: #{tpu_custom_call.1} parent=31 // pred_check_branch
              %203 = sbr.rel target = $region36
            $region35: #{tpu_custom_call.1} parent=31 // pred_region
              // Predicated region
              $region48: #{tpu_custom_call.1} parent=35 // pred_check
                _
              $region49: #{tpu_custom_call.1} parent=35 // pred_check_branch
                %221 = sbr.rel (0) target = $region51
              $region50: #{tpu_custom_call.1} parent=35 // pred_region
                loop: start=0, step=1, limit=1
                $region52: #{tpu_custom_call.1} parent=50 // loop_pre_header
                  _
                $region53: #{tpu_custom_call.1} parent=50 // loop_header
                  %s223 = sphi 0, %s227
                  %p224 = scmp.ge.s32.totalorder %s223, 1
                  %s228 = sphi %s199, %s199
                  %s229 = sphi %s197, %s197
                $region54: #{tpu_custom_call.1} parent=50 // loop_header_branch
                  %226 = sbr.rel (%p224) target = $region58
                $region55: #{tpu_custom_call.1} parent=50 // loop_body
                  _
                $region56: #{tpu_custom_call.1} parent=50 // loop_footer
                  %s227 = sadd.s32 1, %s223
                $region57: #{tpu_custom_call.1} parent=50 // loop_footer_branch
                  %222 = sbr.rel target = $region53
                $region58: #{tpu_custom_call.1} parent=50 // loop_exit
                  _
                %s231 = ssub.s32 16, 1
                loop: start=0, step=1, limit=1
                $region59: #{tpu_custom_call.1} parent=50 // loop_pre_header
                  _
                $region60: #{tpu_custom_call.1} parent=50 // loop_header
                  %s233 = sphi 0, %s237
                  %p234 = scmp.ge.s32.totalorder %s233, 1
                  %s238 = sphi %s199, %s199
                  %s239 = sphi %s197, %s197
                $region61: #{tpu_custom_call.1} parent=50 // loop_header_branch
                  %236 = sbr.rel (%p234) target = $region65
                $region62: #{tpu_custom_call.1} parent=50 // loop_body
                  %v240 = vld [vmem:[%s238] sm:%s231]
                  %241 = vst [vmem:[%s239] sm:%s231] %v240
                  %v242 = vld [vmem:[%s238 + $0x8] sm:%s231]
                  %243 = vst [vmem:[%s239 + $0x4] sm:%s231] %v242
                $region63: #{tpu_custom_call.1} parent=50 // loop_footer
                  %s237 = sadd.s32 1, %s233
                $region64: #{tpu_custom_call.1} parent=50 // loop_footer_branch
                  %232 = sbr.rel target = $region60
                $region65: #{tpu_custom_call.1} parent=50 // loop_exit
                  _
              $region51: #{tpu_custom_call.1} parent=35 // pred_fallthru
                _
            $region36: #{tpu_custom_call.1} parent=31 // pred_fallthru
              _
            // Predicated region
            $region37: #{tpu_custom_call.1} parent=31 // pred_check
              _
            $region38: #{tpu_custom_call.1} parent=31 // pred_check_branch
              %205 = sbr.rel (0) target = $region40
            $region39: #{tpu_custom_call.1} parent=31 // pred_region
              %s207 = ssub.s32 16, 1
              loop: start=0, step=1, limit=1
              $region41: #{tpu_custom_call.1} parent=39 // loop_pre_header
                _
              $region42: #{tpu_custom_call.1} parent=39 // loop_header
                %s209 = sphi 0, %s213
                %p210 = scmp.ge.s32.totalorder %s209, 1
                %s214 = sphi %s199, %s199
                %s215 = sphi %s197, %s197
              $region43: #{tpu_custom_call.1} parent=39 // loop_header_branch
                %212 = sbr.rel (%p210) target = $region47
              $region44: #{tpu_custom_call.1} parent=39 // loop_body
                %v216 = vld [vmem:[%s214] sm:%s207]
                %217 = vst [vmem:[%s215] sm:%s207] %v216
                %v218 = vld [vmem:[%s214 + $0x8] sm:%s207]
                %219 = vst [vmem:[%s215 + $0x4] sm:%s207] %v218
              $region45: #{tpu_custom_call.1} parent=39 // loop_footer
                %s213 = sadd.s32 1, %s209
              $region46: #{tpu_custom_call.1} parent=39 // loop_footer_branch
                %208 = sbr.rel target = $region42
              $region47: #{tpu_custom_call.1} parent=39 // loop_exit
                _
            $region40: #{tpu_custom_call.1} parent=31 // pred_fallthru
              _
          $region32: #{tpu_custom_call.1} parent=27 // pred_fallthru
            _
          %244 = vnop
        $region28: #{tpu_custom_call.1} parent=19 // pred_fallthru
          _
      $region20: #{tpu_custom_call.1} parent=5 // pred_fallthru
        _
      %p245 = scmp.le.s32.totalorder 1, %s17
      %p246 = scmp.lt.s32.totalorder %s17, 5
      %p247 = pnand %p245, %p246
      %p248 = pneg %p247
      // Predicated region
      $region66: #{tpu_custom_call.1} parent=5 // pred_check
        _
      $region67: #{tpu_custom_call.1} parent=5 // pred_check_branch
        %250 = sbr.rel (%p247) target = $region69
      $region68: #{tpu_custom_call.1} parent=5 // pred_region
        %s251 = ssub.s32 %s17, 1
        %s252 = sand.u32 %s70, 1
        %s253 = sand.u32 %s70, 1
        %s254 = smul.addr %s253, 8
        %s255 = scalar_lea.vmem [#allocation3], %s254
        // Predicated region
        $region70: #{tpu_custom_call.1} parent=68 // pred_check
          %p256 = pneg %p83
        $region71: #{tpu_custom_call.1} parent=68 // pred_check_branch
          %258 = sbr.rel (%p256) target = $region73
        $region72: #{tpu_custom_call.1} parent=68 // pred_region
          _
        $region73: #{tpu_custom_call.1} parent=68 // pred_fallthru
          _
        %s259 = smul.u32 16, %s27
        %p260 = scmp.lt.s32.totalorder %s26, 1
        %s261 = scalar_select %p260, %s26, 1
        %p262 = scmp.lt.s32.totalorder %s259, 31
        %s263 = scalar_select %p262, %s259, 31
        %s264 = smul.addr %s261, 32
        %s265 = sadd.s32 %s263, %s264
        %s266 = smul.addr %s265, 4
        %s267 = scalar_lea.vmem %s0, %s266
        %p268 = pneg %p57
        %p269 = pneg %p54
        %s270 = sand.u32 %s70, 1
        %s271 = sand.u32 %s70, 1
        %s272 = smul.addr %s271, 8
        %s273 = scalar_lea.vmem [#allocation3], %s272
        %p274 = pneg %p83
        %p275 = pneg %p80
        %p276 = pneg %p104
        %p277 = pneg %p101
        %p278 = pneg %p130
        %p279 = pneg %p127
        %s280 = sand.u32 %s117, 1
        %s281 = scalar_lea.sflag [#allocation5], %s280
        %s282 = sand.u32 %s117, 1
        %s283 = smul.addr %s282, 4
        %s284 = scalar_lea.vmem [#allocation4], %s283
        %p285 = pneg %p156
        %p286 = pneg %p153
        %s287 = sand.u32 %s143, 1
        %s288 = scalar_lea.sflag [#allocation7], %s287
        %s289 = sand.u32 %s143, 1
        %s290 = smul.addr %s289, 4
        %s291 = scalar_lea.vmem [#allocation6], %s290
        %s292 = smul.u32 16, %s27
        %p293 = scmp.lt.s32.totalorder %s26, 1
        %s294 = scalar_select %p293, %s26, 1
        %p295 = scmp.lt.s32.totalorder %s292, 31
        %s296 = scalar_select %p295, %s292, 31
        %s297 = smul.addr %s294, 32
        %s298 = sadd.s32 %s296, %s297
        %s299 = smul.addr %s298, 4
        %s300 = scalar_lea.vmem %s0, %s299
        %s301 = smul.u32 16, %s27
        %p303 = scmp.eq.s32.totalorder %s27, 0
        // Predicated region
        $region74: #{tpu_custom_call.1} parent=68 // pred_check
          %p304 = pneg %p303
        $region75: #{tpu_custom_call.1} parent=68 // pred_check_branch
          %306 = sbr.rel (%p304) target = $region77
        $region76: #{tpu_custom_call.1} parent=68 // pred_region
          %vm307 = vcmask 261120
          %308 = vst.msk [vmem:[#allocation2] sm:$0xff] %vm307, 0.0
          %309 = vst.msk [vmem:[#allocation2 + $0x8] sm:$0xff] %vm307, 0.0
        $region77: #{tpu_custom_call.1} parent=68 // pred_fallthru
          _
        %v310 = vld [vmem:[#allocation2] sm:$0xff]
        %v311 = vld [vmem:[#allocation2 + $0x8] sm:$0xff]
        %v312 = vld [vmem:[%s255] sm:$0xf]
        %v313 = vld [vmem:[%s255 + $0x4] sm:$0xf]
        %v314 = vld [vmem:[%s300] sm:$0xf]
        %v315 = vld [vmem:[%s300 + $0x4] sm:$0xf]
        %v316 = vld [vmem:[%s300 + $0x8] sm:$0xf]
        %v317 = vld [vmem:[%s300 + $0xc] sm:$0xf]
        %v318 = vld [vmem:[%s300 + $0x10] sm:$0xf]
        %v319 = vld [vmem:[%s300 + $0x14] sm:$0xf]
        %v320 = vld [vmem:[%s300 + $0x18] sm:$0xf]
        %v321 = vld [vmem:[%s300 + $0x1c] sm:$0xf]
        %v322 = vld [vmem:[%s300 + $0x20] sm:$0xf]
        %v323 = vld [vmem:[%s300 + $0x24] sm:$0xf]
        %v324 = vld [vmem:[%s300 + $0x28] sm:$0xf]
        %v325 = vld [vmem:[%s300 + $0x2c] sm:$0xf]
        %v326 = vld [vmem:[%s300 + $0x30] sm:$0xf]
        %v327 = vld [vmem:[%s300 + $0x34] sm:$0xf]
        %v328 = vld [vmem:[%s300 + $0x38] sm:$0xf]
        %v329 = vld [vmem:[%s300 + $0x3c] sm:$0xf]
        %v332 = vunpack.c.l.b16 %v312
        %v333 = vunpack.c.l.b16 %v313
        %v334 = vpack.c.b16 %v333, %v332
        %v352 = vunpack.c.l.b16 %v314
        %v353 = vunpack.c.l.b16 %v315
        %v354 = vunpack.c.l.b16 %v316
        %v355 = vunpack.c.l.b16 %v317
        %v356 = vunpack.c.l.b16 %v318
        %v357 = vunpack.c.l.b16 %v319
        %v358 = vunpack.c.l.b16 %v320
        %v359 = vunpack.c.l.b16 %v321
        %v360 = vunpack.c.l.b16 %v322
        %v361 = vunpack.c.l.b16 %v323
        %v362 = vunpack.c.l.b16 %v324
        %v363 = vunpack.c.l.b16 %v325
        %v364 = vunpack.c.l.b16 %v326
        %v365 = vunpack.c.l.b16 %v327
        %v366 = vunpack.c.l.b16 %v328
        %v367 = vunpack.c.l.b16 %v329
        %v368 = vpack.c.b16 %v353, %v352
        %v369 = vpack.c.b16 %v355, %v354
        %v370 = vpack.c.b16 %v357, %v356
        %v371 = vpack.c.b16 %v359, %v358
        %v372 = vpack.c.b16 %v361, %v360
        %v373 = vpack.c.b16 %v363, %v362
        %v374 = vpack.c.b16 %v365, %v364
        %v375 = vpack.c.b16 %v367, %v366
        %384 = vmatprep.subr.bf16.mxu0 0
        %385 = vmatpush1.bf16.msra.mxu0 %v375
        %386 = vmatprep.subr.bf16.mxu0 0
        %387 = vmatpush1.bf16.msra.mxu0 %v374
        %388 = vmatprep.subr.bf16.mxu0 0
        %389 = vmatpush1.bf16.msra.mxu0 %v373
        %390 = vmatprep.subr.bf16.mxu0 0
        %391 = vmatpush1.bf16.msra.mxu0 %v372
        %392 = vmatprep.subr.bf16.mxu0 0
        %393 = vmatpush1.bf16.msra.mxu0 %v371
        %394 = vmatprep.subr.bf16.mxu0 0
        %395 = vmatpush1.bf16.msra.mxu0 %v370
        %396 = vmatprep.subr.bf16.mxu0 0
        %397 = vmatpush1.bf16.msra.mxu0 %v369
        %398 = vmatprep.subr.bf16.mxu0 0
        %399 = vmatpush1.bf16.msra.mxu0 %v368
        %400 = vmatprep.subr.bf16.mxu0 0
        %401 = vmatpush2.bf16.msra.mxu0 0
        %402 = vmatprep.subr.bf16.mxu0 0
        %403 = vmatpush2.bf16.msra.mxu0 0
        %404 = vmatprep.subr.bf16.mxu0 0
        %405 = vmatpush2.bf16.msra.mxu0 0
        %406 = vmatprep.subr.bf16.mxu0 0
        %407 = vmatpush2.bf16.msra.mxu0 0
        %408 = vmatprep.subr.bf16.mxu0 0
        %409 = vmatpush2.bf16.msra.mxu0 0
        %410 = vmatprep.subr.bf16.mxu0 0
        %411 = vmatpush2.bf16.msra.mxu0 0
        %412 = vmatprep.subr.bf16.mxu0 0
        %413 = vmatpush2.bf16.msra.mxu0 0
        %414 = vmatprep.subr.bf16.mxu0 0
        %415 = vmatpush2.bf16.msra.mxu0 0
        %416 = vmatprep.mubr.bf16.mxu0 0
        %417 = vmatmul.mubr.bf16.gmra.mxu0 %v334
        %v418 = vpop.f32.mrf.mxu0
        %v419 = vadd.f32 0.0, %v418
        %v420 = vpop.f32.mrf.mxu0
        %v421 = vpop.f32.mrf.mxu0
        %v422 = vadd.f32 0.0, %v421
        %v423 = vpop.f32.mrf.mxu0
        %424 = vdwg.mxu0
        %v425 = vadd.f32 %v310, %v419
        %v426 = vadd.f32 %v311, %v422
        %vm427 = vcmask 261120
        %428 = vst.msk [vmem:[#allocation2] sm:$0xff] %vm427, %v425
        %429 = vst.msk [vmem:[#allocation2 + $0x8] sm:$0xff] %vm427, %v426
        %p430 = scmp.eq.s32.totalorder %s27, 1
        // Predicated region
        $region78: #{tpu_custom_call.1} parent=68 // pred_check
          %p431 = pneg %p430
        $region79: #{tpu_custom_call.1} parent=68 // pred_check_branch
          %433 = sbr.rel (%p431) target = $region81
        $region80: #{tpu_custom_call.1} parent=68 // pred_region
          %v434 = vld [vmem:[#allocation2] sm:$0xff]
          %v435 = vld [vmem:[#allocation2 + $0x8] sm:$0xff]
          %v436 = vpack.c.bf16 %v435, %v434
          %v437 = vld [vmem:[%s2] sm:$0xf]
          %v438 = vld [vmem:[%s2 + $0x4] sm:$0xf]
          %v439 = vld [vmem:[%s2 + $0x8] sm:$0xf]
          %v440 = vld [vmem:[%s2 + $0xc] sm:$0xf]
          %v445 = vunpack.c.l.b16 %v437
          %v446 = vunpack.c.l.b16 %v438
          %v447 = vunpack.c.l.b16 %v439
          %v448 = vunpack.c.l.b16 %v440
          %v449 = vpack.c.b16 %v446, %v445
          %v450 = vpack.c.b16 %v448, %v447
          %v454 = vsel %vm427, %v436, 0
          %456 = vmatprep.subr.bf16.mxu0 0
          %457 = vmatpush1.bf16.msra.mxu0 0
          %458 = vmatprep.subr.bf16.mxu0 0
          %459 = vmatpush1.bf16.msra.mxu0 0
          %460 = vmatprep.subr.bf16.mxu0 0
          %461 = vmatpush1.bf16.msra.mxu0 0
          %462 = vmatprep.subr.bf16.mxu0 0
          %463 = vmatpush1.bf16.msra.mxu0 0
          %464 = vmatprep.subr.bf16.mxu0 0
          %465 = vmatpush1.bf16.msra.mxu0 0
          %466 = vmatprep.subr.bf16.mxu0 0
          %467 = vmatpush1.bf16.msra.mxu0 0
          %468 = vmatprep.subr.bf16.mxu0 0
          %469 = vmatpush1.bf16.msra.mxu0 %v450
          %470 = vmatprep.subr.bf16.mxu0 0
          %471 = vmatpush1.bf16.msra.mxu0 %v449
          %472 = vmatprep.subr.bf16.mxu0 0
          %473 = vmatpush2.bf16.msra.mxu0 0
          %474 = vmatprep.subr.bf16.mxu0 0
          %475 = vmatpush2.bf16.msra.mxu0 0
          %476 = vmatprep.subr.bf16.mxu0 0
          %477 = vmatpush2.bf16.msra.mxu0 0
          %478 = vmatprep.subr.bf16.mxu0 0
          %479 = vmatpush2.bf16.msra.mxu0 0
          %480 = vmatprep.subr.bf16.mxu0 0
          %481 = vmatpush2.bf16.msra.mxu0 0
          %482 = vmatprep.subr.bf16.mxu0 0
          %483 = vmatpush2.bf16.msra.mxu0 0
          %484 = vmatprep.subr.bf16.mxu0 0
          %485 = vmatpush2.bf16.msra.mxu0 0
          %486 = vmatprep.subr.bf16.mxu0 0
          %487 = vmatpush2.bf16.msra.mxu0 0
          %488 = vmatprep.mubr.bf16.mxu0 0
          %489 = vmatmul.mubr.bf16.gmra.mxu0 %v454
          %v490 = vpop.f32.mrf.mxu0
          %v491 = vadd.f32 0.0, %v490
          %v492 = vpop.f32.mrf.mxu0
          %v493 = vpop.f32.mrf.mxu0
          %v494 = vpop.f32.mrf.mxu0
          %495 = vdwg.mxu0
          %v497 = vrot.slane %v436, 4
          %498 = vrot.lane.b32.xlu0 %v449, 96
          %v499 = vpop.permute.xlu0 %498
          %500 = vrot.lane.b32.xlu0 %v450, 96
          %v501 = vpop.permute.xlu0 %500
          %v505 = vsel %vm427, %v497, 0
          %507 = vmatprep.subr.bf16.mxu0 0
          %508 = vmatpush1.bf16.msra.mxu0 0
          %509 = vmatprep.subr.bf16.mxu0 0
          %510 = vmatpush1.bf16.msra.mxu0 0
          %511 = vmatprep.subr.bf16.mxu0 0
          %512 = vmatpush1.bf16.msra.mxu0 0
          %513 = vmatprep.subr.bf16.mxu0 0
          %514 = vmatpush1.bf16.msra.mxu0 0
          %515 = vmatprep.subr.bf16.mxu0 0
          %516 = vmatpush1.bf16.msra.mxu0 0
          %517 = vmatprep.subr.bf16.mxu0 0
          %518 = vmatpush1.bf16.msra.mxu0 0
          %519 = vmatprep.subr.bf16.mxu0 0
          %520 = vmatpush1.bf16.msra.mxu0 %v501
          %521 = vmatprep.subr.bf16.mxu0 0
          %522 = vmatpush1.bf16.msra.mxu0 %v499
          %523 = vmatprep.subr.bf16.mxu0 0
          %524 = vmatpush2.bf16.msra.mxu0 0
          %525 = vmatprep.subr.bf16.mxu0 0
          %526 = vmatpush2.bf16.msra.mxu0 0
          %527 = vmatprep.subr.bf16.mxu0 0
          %528 = vmatpush2.bf16.msra.mxu0 0
          %529 = vmatprep.subr.bf16.mxu0 0
          %530 = vmatpush2.bf16.msra.mxu0 0
          %531 = vmatprep.subr.bf16.mxu0 0
          %532 = vmatpush2.bf16.msra.mxu0 0
          %533 = vmatprep.subr.bf16.mxu0 0
          %534 = vmatpush2.bf16.msra.mxu0 0
          %535 = vmatprep.subr.bf16.mxu0 0
          %536 = vmatpush2.bf16.msra.mxu0 0
          %537 = vmatprep.subr.bf16.mxu0 0
          %538 = vmatpush2.bf16.msra.mxu0 0
          %539 = vmatprep.mubr.bf16.mxu0 0
          %540 = vmatmul.mubr.bf16.gmra.mxu0 %v505
          %v541 = vpop.f32.mrf.mxu0
          %v542 = vadd.f32 0.0, %v541
          %v543 = vpop.f32.mrf.mxu0
          %v544 = vpop.f32.mrf.mxu0
          %v545 = vpop.f32.mrf.mxu0
          %546 = vdwg.mxu0
          %v547 = vpack.c.bf16 %v491, %v491
          %vm548 = vcmask 257024
          %549 = vst.msk [vmem:[%s284] sm:$0xf] %vm548, %v547
          %v550 = vpack.c.bf16 %v542, %v542
          %551 = vst.msk [vmem:[%s291] sm:$0xf] %vm548, %v550
        $region81: #{tpu_custom_call.1} parent=68 // pred_fallthru
          _
        %s552 = sand.u32 %s117, 1
        %s553 = scalar_lea.sflag [#allocation5], %s552
        %s554 = sand.u32 %s117, 1
        %s555 = smul.addr %s554, 4
        %s556 = scalar_lea.vmem [#allocation4], %s555
        %s557 = sand.u32 %s143, 1
        %s558 = scalar_lea.sflag [#allocation7], %s557
        %s559 = sand.u32 %s143, 1
        %s560 = smul.addr %s559, 4
        %s561 = scalar_lea.vmem [#allocation6], %s560
        // Predicated region
        $region82: #{tpu_custom_call.1} parent=68 // pred_check
          %p562 = pneg %p127
        $region83: #{tpu_custom_call.1} parent=68 // pred_check_branch
          %564 = sbr.rel (%p562) target = $region85
        $region84: #{tpu_custom_call.1} parent=68 // pred_region
          %s566 = ssub.s32 64, 64
          %567 = vsyncadd %s553, %s566
          %s568 = smul.addr %s26, 64
          %s569 = scalar_lea.hbm %s3, %s568
          %s571 = sshll.u32 %s556, 4
          %s572 = int_to_ptr.vmem [resolvable:$true] %s571
          %574 = dma.vmem_to_hbm [thread:$0]  %s572, 64, %s569, %s553
        $region85: #{tpu_custom_call.1} parent=68 // pred_fallthru
          _
        // Predicated region
        $region86: #{tpu_custom_call.1} parent=68 // pred_check
          %p575 = pneg %p153
        $region87: #{tpu_custom_call.1} parent=68 // pred_check_branch
          %577 = sbr.rel (%p575) target = $region89
        $region88: #{tpu_custom_call.1} parent=68 // pred_region
          %s579 = ssub.s32 64, 64
          %580 = vsyncadd %s558, %s579
          %s581 = smul.addr %s26, 64
          %s582 = scalar_lea.hbm %s4, %s581
          %s584 = sshll.u32 %s561, 4
          %s585 = int_to_ptr.vmem [resolvable:$true] %s584
          %587 = dma.vmem_to_hbm [thread:$0]  %s585, 64, %s582, %s558
        $region89: #{tpu_custom_call.1} parent=68 // pred_fallthru
          _
      $region69: #{tpu_custom_call.1} parent=5 // pred_fallthru
        _
      %p588 = scmp.le.s32.totalorder 2, %s17
      // Predicated region
      $region90: #{tpu_custom_call.1} parent=5 // pred_check
        %p589 = pneg %p588
      $region91: #{tpu_custom_call.1} parent=5 // pred_check_branch
        %591 = sbr.rel (%p589) target = $region93
      $region92: #{tpu_custom_call.1} parent=5 // pred_region
        %s592 = ssub.s32 %s17, 2
        // Predicated region
        $region94: #{tpu_custom_call.1} parent=92 // pred_check
          %p593 = pneg %p133
        $region95: #{tpu_custom_call.1} parent=92 // pred_check_branch
          %595 = sbr.rel (%p593) target = $region97
        $region96: #{tpu_custom_call.1} parent=92 // pred_region
          %s596 = sand.u32 %s118, 1
          %s597 = scalar_lea.sflag [#allocation5], %s596
          %s598 = sand.u32 %s118, 1
          %s599 = smul.addr %s598, 4
          %s600 = scalar_lea.vmem [#allocation4], %s599
          %601 = dma.done %s597, 64
        $region97: #{tpu_custom_call.1} parent=92 // pred_fallthru
          _
        // Predicated region
        $region98: #{tpu_custom_call.1} parent=92 // pred_check
          %p602 = pneg %p159
        $region99: #{tpu_custom_call.1} parent=92 // pred_check_branch
          %604 = sbr.rel (%p602) target = $region101
        $region100: #{tpu_custom_call.1} parent=92 // pred_region
          %s605 = sand.u32 %s144, 1
          %s606 = scalar_lea.sflag [#allocation7], %s605
          %s607 = sand.u32 %s144, 1
          %s608 = smul.addr %s607, 4
          %s609 = scalar_lea.vmem [#allocation6], %s608
          %610 = dma.done %s606, 64
        $region101: #{tpu_custom_call.1} parent=92 // pred_fallthru
          _
      $region93: #{tpu_custom_call.1} parent=5 // pred_fallthru
        _
    $region6: #{tpu_custom_call.1} parent=1 // loop_footer
      %s21 = sadd.s32 1, %s17
    $region7: #{tpu_custom_call.1} parent=1 // loop_footer_branch
      %16 = sbr.rel target = $region3
    $region8: #{tpu_custom_call.1} parent=1 // loop_exit
      _
    %611 = vsyncpa [#allocation5], 1
    %s612 = scalar_lea.sflag [#allocation5], 1
    %613 = vsyncpa %s612, 1
    %614 = vsyncpa [#allocation7], 1
    %s615 = scalar_lea.sflag [#allocation7], 1
    %616 = vsyncpa %s615, 1

</llo_original>
